<compile_context>
chip_gen: v5e
topology: v5e:2x2
jax: 0.10.0
libtpu: 0.0.40
codegen_flags: <defaults>
</compile_context>

<pallas_src>
import jax
import jax.numpy as jnp
from jax.experimental import pallas as pl
from jax.experimental.pallas import tpu as pltpu

HIDDEN = 256


def actor_kernel(x_ref, w1b1_ref, whead_ref, bhead_ref, out_ref):
    S = x_ref.shape[1]            # state_dim (tiny, e.g. 3)
    A = out_ref.shape[1] // 2     # action_dim

    # ---- fc1 on the VPU: h = sum_k x[:, k] * W1[k, :] + b1, then ReLU ----
    # b1 is the last row of the packed (S+1, HIDDEN) array -> accumulator init.
    h = x_ref[:, 0:1] * w1b1_ref[0:1, :] + w1b1_ref[S:S + 1, :]
    for k in range(1, S):         # static Python loop, S is tiny
        h = h + x_ref[:, k:k + 1] * w1b1_ref[k:k + 1, :]
    h = jnp.maximum(h, 0.0)

    # ---- fused heads: one MXU matmul -> (B, 2A) = [mu_lin || std_lin] ----
    head = jnp.dot(h, whead_ref[...], preferred_element_type=jnp.float32)
    head = head + bhead_ref[...]

    mu_part = 2.0 * jnp.tanh(head)
    # one-exp numerically-stable softplus (matches F.softplus)
    sp_part = jnp.maximum(head, 0.0) + jnp.log1p(jnp.exp(-jnp.abs(head)))

    cols = jax.lax.broadcasted_iota(jnp.int32, head.shape, 1)
    out_ref[...] = jnp.where(cols < A, mu_part, sp_part).astype(out_ref.dtype)


def pack_params(params):
    """Pack (w1, b1, wmu, bmu, wstd, bstd) into 3 kernel-friendly arrays."""
    w1, b1, wmu, bmu, wstd, bstd = params
    w1b1 = jnp.concatenate([w1, b1], axis=0)          # (S+1, HIDDEN)
    whead = jnp.concatenate([wmu, wstd], axis=1)      # (HIDDEN, 2A)
    bhead = jnp.concatenate([bmu, bstd], axis=1)      # (1, 2A)
    return w1b1, whead, bhead


def actor_forward(x, packed_params):
    """x: (B, state_dim) f32 -> (mu, std), each (B, action_dim) f32."""
    w1b1, whead, bhead = packed_params
    B, S = x.shape
    H = whead.shape[0]
    A = whead.shape[1] // 2

    full = lambda shape: pl.BlockSpec(shape, lambda: tuple(0 for _ in shape))

    cost = pl.CostEstimate(
        flops=2 * B * S * H + 2 * B * H * (2 * A) + 8 * B * (2 * A),
        transcendentals=3 * B * (2 * A),              # tanh, exp, log1p
        bytes_accessed=4 * (B * S + (S + 1) * H + H * 2 * A + 2 * A + B * 2 * A),
    )

    out = pl.pallas_call(
        actor_kernel,
        out_shape=jax.ShapeDtypeStruct((B, 2 * A), jnp.float32),
        grid=(),
        in_specs=[full(x.shape), full(w1b1.shape), full(whead.shape), full(bhead.shape)],
        out_specs=full((B, 2 * A)),
        compiler_params=pltpu.CompilerParams(vmem_limit_bytes=8 * 1024 * 1024),
        cost_estimate=cost,
    )(x, w1b1, whead, bhead)

    mu = out[:, :A]
    std = out[:, A:]
    return mu, std


def init_params(key, state_dim, action_dim, hidden=HIDDEN):
    """Deterministic init mimicking torch.nn.Linear default (uniform +-1/sqrt(fan_in))."""
    ks = jax.random.split(key, 6)

    def lin(kw, kb, fan_in, fan_out):
        bound = 1.0 / jnp.sqrt(jnp.float32(fan_in))
        w = jax.random.uniform(kw, (fan_in, fan_out), jnp.float32, -bound, bound)
        b = jax.random.uniform(kb, (1, fan_out), jnp.float32, -bound, bound)
        return w, b

    w1, b1 = lin(ks[0], ks[1], state_dim, hidden)
    wmu, bmu = lin(ks[2], ks[3], hidden, action_dim)
    wstd, bstd = lin(ks[4], ks[5], hidden, action_dim)
    return (w1, b1, wmu, bmu, wstd, bstd)


def actor_forward_ref(x, params):
    """Pure-JAX reference for correctness check."""
    w1, b1, wmu, bmu, wstd, bstd = params
    h = jax.nn.relu(x @ w1 + b1)
    mu = 2.0 * jnp.tanh(h @ wmu + bmu)
    std = jax.nn.softplus(h @ wstd + bstd)
    return mu, std


if __name__ == "__main__":
    # Pendulum-v1: state_dim=3, action_dim=1; small batch for the demo.
    B, STATE_DIM, ACTION_DIM = 8, 3, 1

    key = jax.random.PRNGKey(0)
    kp, kx = jax.random.split(key)
    params = init_params(kp, STATE_DIM, ACTION_DIM)
    packed = pack_params(params)
    x = jax.random.normal(kx, (B, STATE_DIM), jnp.float32)

    mu, std = actor_forward(x, packed)
    jax.block_until_ready((mu, std))

    mu_ref, std_ref = actor_forward_ref(x, params)
    assert mu.shape == (B, ACTION_DIM) and std.shape == (B, ACTION_DIM)
    assert jnp.allclose(mu, mu_ref, atol=1e-5, rtol=1e-5)
    assert jnp.allclose(std, std_ref, atol=1e-5, rtol=1e-5)

    # TODO(synk): get_action / train_net (Normal sampling, Adam update) are host-side
    # training logic, not part of the forward pass, and are intentionally not kernelized.
    print("KERNEL_OK")
</pallas_src>

<mosaic_0001>
module attributes {stable_mosaic.version = 11 : i64} {
  func.func @actor_kernel(%arg0: memref<8x3xf32, #tpu.memory_space<vmem>>, %arg1: memref<4x256xf32, #tpu.memory_space<vmem>>, %arg2: memref<256x2xf32, #tpu.memory_space<vmem>>, %arg3: memref<1x2xf32, #tpu.memory_space<vmem>>, %arg4: memref<8x2xf32, #tpu.memory_space<vmem>>) attributes {dimension_semantics = [], scalar_prefetch = 0 : i64, scratch_operands = 0 : i64, tpu.core_type = #tpu.core_type<tc>} {
    %c0 = arith.constant 0 : index
    %c0_0 = arith.constant 0 : index
    %0 = vector.load %arg0[%c0, %c0_0] : memref<8x3xf32, #tpu.memory_space<vmem>>, vector<8x1xf32>
    %c0_1 = arith.constant 0 : index
    %c0_2 = arith.constant 0 : index
    %1 = vector.load %arg1[%c0_1, %c0_2] : memref<4x256xf32, #tpu.memory_space<vmem>>, vector<1x256xf32>
    %2 = vector.broadcast %0 : vector<8x1xf32> to vector<8x256xf32>
    %3 = vector.broadcast %1 : vector<1x256xf32> to vector<8x256xf32>
    %4 = arith.mulf %2, %3 : vector<8x256xf32>
    %c3 = arith.constant 3 : index
    %c0_3 = arith.constant 0 : index
    %5 = vector.load %arg1[%c3, %c0_3] : memref<4x256xf32, #tpu.memory_space<vmem>>, vector<1x256xf32>
    %6 = vector.broadcast %5 : vector<1x256xf32> to vector<8x256xf32>
    %7 = arith.addf %4, %6 : vector<8x256xf32>
    %c0_4 = arith.constant 0 : index
    %c1 = arith.constant 1 : index
    %8 = vector.load %arg0[%c0_4, %c1] : memref<8x3xf32, #tpu.memory_space<vmem>>, vector<8x1xf32>
    %c1_5 = arith.constant 1 : index
    %c0_6 = arith.constant 0 : index
    %9 = vector.load %arg1[%c1_5, %c0_6] : memref<4x256xf32, #tpu.memory_space<vmem>>, vector<1x256xf32>
    %10 = vector.broadcast %8 : vector<8x1xf32> to vector<8x256xf32>
    %11 = vector.broadcast %9 : vector<1x256xf32> to vector<8x256xf32>
    %12 = arith.mulf %10, %11 : vector<8x256xf32>
    %13 = arith.addf %7, %12 : vector<8x256xf32>
    %c0_7 = arith.constant 0 : index
    %c2 = arith.constant 2 : index
    %14 = vector.load %arg0[%c0_7, %c2] : memref<8x3xf32, #tpu.memory_space<vmem>>, vector<8x1xf32>
    %c2_8 = arith.constant 2 : index
    %c0_9 = arith.constant 0 : index
    %15 = vector.load %arg1[%c2_8, %c0_9] : memref<4x256xf32, #tpu.memory_space<vmem>>, vector<1x256xf32>
    %16 = vector.broadcast %14 : vector<8x1xf32> to vector<8x256xf32>
    %17 = vector.broadcast %15 : vector<1x256xf32> to vector<8x256xf32>
    %18 = arith.mulf %16, %17 : vector<8x256xf32>
    %19 = arith.addf %13, %18 : vector<8x256xf32>
    %cst = arith.constant 0.000000e+00 : f32
    %20 = vector.broadcast %cst : f32 to vector<8x256xf32>
    %21 = arith.maximumf %19, %20 : vector<8x256xf32>
    %c0_10 = arith.constant 0 : index
    %c0_11 = arith.constant 0 : index
    %22 = vector.load %arg2[%c0_10, %c0_11] : memref<256x2xf32, #tpu.memory_space<vmem>>, vector<256x2xf32>
    %cst_12 = arith.constant dense<0.000000e+00> : vector<8x2xf32>
    %23 = tpu.matmul %21, %22, %cst_12 {dimension_numbers = #tpu.dot_dimension_numbers<[1], [0], [0], [1], [0, 0, 1, 1], [], []>} : vector<8x256xf32>, vector<256x2xf32>, vector<8x2xf32> -> vector<8x2xf32>
    %c0_13 = arith.constant 0 : index
    %c0_14 = arith.constant 0 : index
    %24 = vector.load %arg3[%c0_13, %c0_14] : memref<1x2xf32, #tpu.memory_space<vmem>>, vector<1x2xf32>
    %25 = vector.broadcast %24 : vector<1x2xf32> to vector<8x2xf32>
    %26 = arith.addf %23, %25 : vector<8x2xf32>
    %27 = math.tanh %26 : vector<8x2xf32>
    %cst_15 = arith.constant 2.000000e+00 : f32
    %28 = vector.broadcast %cst_15 : f32 to vector<8x2xf32>
    %29 = arith.mulf %28, %27 : vector<8x2xf32>
    %cst_16 = arith.constant 0.000000e+00 : f32
    %30 = vector.broadcast %cst_16 : f32 to vector<8x2xf32>
    %31 = arith.maximumf %26, %30 : vector<8x2xf32>
    %32 = math.absf %26 : vector<8x2xf32>
    %cst_17 = arith.constant 0.000000e+00 : f32
    %33 = vector.broadcast %cst_17 : f32 to vector<8x2xf32>
    %34 = arith.subf %33, %32 : vector<8x2xf32>
    %35 = math.exp %34 : vector<8x2xf32>
    %36 = math.log1p %35 : vector<8x2xf32>
    %37 = arith.addf %31, %36 : vector<8x2xf32>
    %38 = tpu.iota {dimensions = array<i32: 1>} : vector<8x2xi32>
    %c1_i32 = arith.constant 1 : i32
    %39 = vector.broadcast %c1_i32 : i32 to vector<8x2xi32>
    %40 = arith.cmpi slt, %38, %39 : vector<8x2xi32>
    %41 = arith.select %40, %29, %37 : vector<8x2xi1>, vector<8x2xf32>
    %c0_18 = arith.constant 0 : index
    %c0_19 = arith.constant 0 : index
    %42 = vector.load %arg4[%c0_18, %c0_19] : memref<8x2xf32, #tpu.memory_space<vmem>>, vector<8x2xf32>
    tpu.vector_store %arg4[%c0_18, %c0_19], %41 {strides = array<i32>} : memref<8x2xf32, #tpu.memory_space<vmem>>, vector<8x2xf32>,
    return
  }
}

</mosaic_0001>

<llo_original>
// kernel: tpu_custom_call.1
$region0: #{tpu_custom_call.1}
  #allocation0 [shape = 'u32[]', space=smem, size = 0x4, offset = 0x4, fixed_abs, tag = 'smem constant byte address 0x4 - core index']
  #allocation1 [shape = 'u32[72,128]{1,0:T(1,128)}', space=vmem, size = 0x9000, scoped, tag = 'internal scratch']
  %s0 = inlined_call_operand.vmem [shape: f32[8,3], index: 0, kind: input, shape index: {}]
  %s1 = inlined_call_operand.vmem [shape: f32[4,256], index: 1, kind: input, shape index: {}]
  %s2 = inlined_call_operand.vmem [shape: f32[256,2], index: 2, kind: input, shape index: {}]
  %s3 = inlined_call_operand.vmem [shape: f32[1,2], index: 3, kind: input, shape index: {}]
  %s4 = inlined_call_operand.vmem [shape: f32[8,2], index: 4, kind: output, shape index: {}]
  %s5 = sld [smem:[#allocation0]]
  $region26: #{tpu_custom_call.1} parent=0
    _
  %s7 = ssub.s32 1, %s5
  %s8 = scalar_select 0, %s7, %s5
  // Predicated region
  $region2: #{tpu_custom_call.1} parent=0 // pred_check
    _
  $region3: #{tpu_custom_call.1} parent=0 // pred_check_branch
    %10 = sbr.rel (0) target = $region5
  $region4: #{tpu_custom_call.1} parent=0 // pred_region
    _
  $region5: #{tpu_custom_call.1} parent=0 // pred_fallthru
    _
  // Predicated region
  $region6: #{tpu_custom_call.1} parent=0 // pred_check
    _
  $region7: #{tpu_custom_call.1} parent=0 // pred_check_branch
    %12 = sbr.rel (0) target = $region9
  $region8: #{tpu_custom_call.1} parent=0 // pred_region
    _
  $region9: #{tpu_custom_call.1} parent=0 // pred_fallthru
    _
  // Predicated region
  $region10: #{tpu_custom_call.1} parent=0 // pred_check
    _
  $region11: #{tpu_custom_call.1} parent=0 // pred_check_branch
    %14 = sbr.rel (0) target = $region13
  $region12: #{tpu_custom_call.1} parent=0 // pred_region
    _
  $region13: #{tpu_custom_call.1} parent=0 // pred_fallthru
    _
  // Predicated region
  $region14: #{tpu_custom_call.1} parent=0 // pred_check
    _
  $region15: #{tpu_custom_call.1} parent=0 // pred_check_branch
    %16 = sbr.rel (0) target = $region17
  $region16: #{tpu_custom_call.1} parent=0 // pred_region
    _
  $region17: #{tpu_custom_call.1} parent=0 // pred_fallthru
    _
  %v17 = vld [vmem:[%s0] sm:$0xff]
  %v18 = vld [vmem:[%s1] ss:$4 sm:$0x3]
  %20 = vset.pattern.permute.xlu0 0
  %21 = vperm.xlu0 %20, %v17
  %v22 = vpop.permute.xlu0 %21
  %v25 = vperm.slane %v18, 0
  %v26 = vperm.slane %v18, 1
  %v29 = vmul.f32 %v22, %v25
  %v30 = vmul.f32 %v22, %v26
  %s31 = scalar_lea.vmem %s1, 3
  %v32 = vld [vmem:[%s31] ss:$4 sm:$0x3]
  %v34 = vperm.slane %v32, 0
  %v35 = vperm.slane %v32, 1
  %v38 = vadd.f32 %v29, %v34
  %v39 = vadd.f32 %v30, %v35
  %s40 = scalar_lea.vmem %s1, 1
  %v41 = vld [vmem:[%s40] ss:$4 sm:$0x3]
  %42 = vset.pattern.permute.xlu0 1
  %43 = vperm.xlu0 %42, %v17
  %v44 = vpop.permute.xlu0 %43
  %v47 = vperm.slane %v41, 0
  %v48 = vperm.slane %v41, 1
  %v51 = vmul.f32 %v44, %v47
  %v52 = vmul.f32 %v44, %v48
  %v53 = vadd.f32 %v38, %v51
  %v54 = vadd.f32 %v39, %v52
  %s55 = scalar_lea.vmem %s1, 2
  %v56 = vld [vmem:[%s55] ss:$4 sm:$0x3]
  %57 = vset.pattern.permute.xlu0 2
  %58 = vperm.xlu0 %57, %v17
  %v59 = vpop.permute.xlu0 %58
  %v62 = vperm.slane %v56, 0
  %v63 = vperm.slane %v56, 1
  %v66 = vmul.f32 %v59, %v62
  %v67 = vmul.f32 %v59, %v63
  %v68 = vadd.f32 %v53, %v66
  %v69 = vadd.f32 %v54, %v67
  %v70 = vmax.f32 %v68, 0.0
  %v71 = vmax.f32 %v69, 0.0
  %v72 = vld [vmem:[%s2] sm:$0xff]
  %v73 = vld [vmem:[%s2 + $0x8] sm:$0xff]
  %v74 = vld [vmem:[%s2 + $0x10] sm:$0xff]
  %v75 = vld [vmem:[%s2 + $0x18] sm:$0xff]
  %v76 = vld [vmem:[%s2 + $0x20] sm:$0xff]
  %v77 = vld [vmem:[%s2 + $0x28] sm:$0xff]
  %v78 = vld [vmem:[%s2 + $0x30] sm:$0xff]
  %v79 = vld [vmem:[%s2 + $0x38] sm:$0xff]
  %v80 = vld [vmem:[%s2 + $0x40] sm:$0xff]
  %v81 = vld [vmem:[%s2 + $0x48] sm:$0xff]
  %v82 = vld [vmem:[%s2 + $0x50] sm:$0xff]
  %v83 = vld [vmem:[%s2 + $0x58] sm:$0xff]
  %v84 = vld [vmem:[%s2 + $0x60] sm:$0xff]
  %v85 = vld [vmem:[%s2 + $0x68] sm:$0xff]
  %v86 = vld [vmem:[%s2 + $0x70] sm:$0xff]
  %v87 = vld [vmem:[%s2 + $0x78] sm:$0xff]
  %v88 = vld [vmem:[%s2 + $0x80] sm:$0xff]
  %v89 = vld [vmem:[%s2 + $0x88] sm:$0xff]
  %v90 = vld [vmem:[%s2 + $0x90] sm:$0xff]
  %v91 = vld [vmem:[%s2 + $0x98] sm:$0xff]
  %v92 = vld [vmem:[%s2 + $0xa0] sm:$0xff]
  %v93 = vld [vmem:[%s2 + $0xa8] sm:$0xff]
  %v94 = vld [vmem:[%s2 + $0xb0] sm:$0xff]
  %v95 = vld [vmem:[%s2 + $0xb8] sm:$0xff]
  %v96 = vld [vmem:[%s2 + $0xc0] sm:$0xff]
  %v97 = vld [vmem:[%s2 + $0xc8] sm:$0xff]
  %v98 = vld [vmem:[%s2 + $0xd0] sm:$0xff]
  %v99 = vld [vmem:[%s2 + $0xd8] sm:$0xff]
  %v100 = vld [vmem:[%s2 + $0xe0] sm:$0xff]
  %v101 = vld [vmem:[%s2 + $0xe8] sm:$0xff]
  %v102 = vld [vmem:[%s2 + $0xf0] sm:$0xff]
  %v103 = vld [vmem:[%s2 + $0xf8] sm:$0xff]
  %v104 = vld [vmem:[%s3] sm:$0x1]
  %v106 = vperm.slane %v104, 0
  %108 = vmatpush.msra.mxu0 %v87
  %109 = vmatpush.msra.mxu0 %v86
  %110 = vmatpush.msra.mxu0 %v85
  %111 = vmatpush.msra.mxu0 %v84
  %112 = vmatpush.msra.mxu0 %v83
  %113 = vmatpush.msra.mxu0 %v82
  %114 = vmatpush.msra.mxu0 %v81
  %115 = vmatpush.msra.mxu0 %v80
  %116 = vmatpush.msra.mxu0 %v79
  %117 = vmatpush.msra.mxu0 %v78
  %118 = vmatpush.msra.mxu0 %v77
  %119 = vmatpush.msra.mxu0 %v76
  %120 = vmatpush.msra.mxu0 %v75
  %121 = vmatpush.msra.mxu0 %v74
  %122 = vmatpush.msra.mxu0 %v73
  %123 = vmatpush.msra.mxu0 %v72
  %124 = vmatmul.f32.gmra.mxu0 %v70
  %v125 = vpop.f32.mrf.mxu0
  %v126 = vadd.f32 %v106, %v125
  %127 = vdwg.mxu0
  %128 = vmatpush.msra.mxu0 %v103
  %129 = vmatpush.msra.mxu0 %v102
  %130 = vmatpush.msra.mxu0 %v101
  %131 = vmatpush.msra.mxu0 %v100
  %132 = vmatpush.msra.mxu0 %v99
  %133 = vmatpush.msra.mxu0 %v98
  %134 = vmatpush.msra.mxu0 %v97
  %135 = vmatpush.msra.mxu0 %v96
  %136 = vmatpush.msra.mxu0 %v95
  %137 = vmatpush.msra.mxu0 %v94
  %138 = vmatpush.msra.mxu0 %v93
  %139 = vmatpush.msra.mxu0 %v92
  %140 = vmatpush.msra.mxu0 %v91
  %141 = vmatpush.msra.mxu0 %v90
  %142 = vmatpush.msra.mxu0 %v89
  %143 = vmatpush.msra.mxu0 %v88
  %144 = vmatmul.f32.gmra.mxu0 %v71
  %v145 = vpop.f32.mrf.mxu0
  %v146 = vadd.f32 %v126, %v145
  %147 = vdwg.mxu0
  %v148 = vtanh.pop %v146
  %v149 = vmul.f32 %v148, 2.0
  %v150 = vmax.f32 %v146, 0.0
  %v151 = vand.u32 2147483647, %v146
  %v152 = vsub.f32 0.0, %v151
  %v153 = vmul.f32 %v152, 1.442695
  %v154 = vpow.pop %v153
  %v155 = vadd.f32 %v154, 1.0
  %v156 = vlog2.pop %v155
  %v157 = vmul.f32 %v156, 0.6931472
  %v158 = vmul.f32 -0.5, %v154
  %v159 = vadd.f32 %v158, 1.0
  %v160 = vmul.f32 %v159, %v154
  %v161 = vand.u32 2147483647, %v154
  %vm162 = vcmp.lt.f32.partialorder %v161, 0.0004427343
  %v163 = vsel %vm162, %v160, %v157
  %v164 = vadd.f32 %v150, %v163
  %v165 = vlaneseq
  %v166 = vand.u32 %v165, 127
  %vm167 = vcmp.lt.s32.totalorder %v166, 1
  %v168 = vsel %vm167, %v149, %v164
  %vm169 = vcmask 15360
  %170 = vst.msk [vmem:[%s4] sm:$0xff] %vm169, %v168
  // Predicated region
  $region18: #{tpu_custom_call.1} parent=0 // pred_check
    _
  $region19: #{tpu_custom_call.1} parent=0 // pred_check_branch
    %172 = sbr.rel (0) target = $region21
  $region20: #{tpu_custom_call.1} parent=0 // pred_region
    _
  $region21: #{tpu_custom_call.1} parent=0 // pred_fallthru
    _
  // Predicated region
  $region22: #{tpu_custom_call.1} parent=0 // pred_check
    _
  $region23: #{tpu_custom_call.1} parent=0 // pred_check_branch
    %174 = sbr.rel (0) target = $region25
  $region24: #{tpu_custom_call.1} parent=0 // pred_region
    _
  $region25: #{tpu_custom_call.1} parent=0 // pred_fallthru
    _

</llo_original>
